<compile_context>
chip_gen: v7x
topology: tpu7x:2x2x1
jax: 0.10.0
libtpu: 0.0.40
codegen_flags: <defaults>
</compile_context>

<pallas_src>
import jax
import jax.numpy as jnp
from jax.experimental import pallas as pl
from jax.experimental.pallas import tpu as pltpu


def _mlp_kernel(x_ref, w1_ref, b1_ref, w2_ref, b2_ref, o_ref):
    """Fused: (bn1+fc1+bn2 folded) -> leaky_relu -> fc2 for one batch tile."""
    # Cast x in-kernel (HBM copy stays f32; avoids an extra XLA pass over x).
    x = x_ref[...].astype(w1_ref.dtype)

    # fc1 with bn1/bn2 pre-folded into the weights; f32 accumulation on MXU.
    h = jnp.dot(x, w1_ref[...], preferred_element_type=jnp.float32)
    h = h + b1_ref[...]

    # LeakyReLU (PyTorch default negative_slope = 0.01): mul + max on the VPU.
    h = jnp.maximum(h, 0.01 * h)

    # fc2
    out = jnp.dot(h.astype(w2_ref.dtype), w2_ref[...],
                  preferred_element_type=jnp.float32)
    o_ref[...] = (out + b2_ref[...]).astype(o_ref.dtype)


def _num_tensorcores():
    """Best-effort TensorCores-per-chip query (2 on v7x, else 1)."""
    try:
        info = pltpu.get_tpu_info()
        for attr in ("num_tensorcores", "tensorcores_per_chip", "num_cores",
                     "core_count_per_chip"):
            v = getattr(info, attr, None)
            if isinstance(v, int) and v > 0:
                return v
    except Exception:
        pass
    return 1


def _pick_block(n, block_n, num_tc):
    """16-row-aligned batch tile, capped at block_n.

    Only forces >=2 grid steps when >=2 TensorCores exist (v7x); on a single
    TC the grid is a sequential loop, so a split just doubles per-step cost.
    """
    n16 = ((n + 15) // 16) * 16
    blk = max(16, (min(block_n, n16) // 16) * 16)
    if num_tc >= 2 and blk >= n16 and n16 >= 32:
        # Split the batch across the two TensorCores via the "parallel" axis.
        blk = max(16, ((n16 // 2 + 15) // 16) * 16)
    return blk


def mlp_forward(x, params, *, block_n=2048, compute_dtype=jnp.bfloat16):
    """x: (N, in_size) float32.  Returns (N, 4) float32."""
    n, d = x.shape
    f = params["w1"].shape[1]
    n_out = params["w2"].shape[1]

    # ---- fold eval-mode BatchNorms into fc1 (once per call, param-sized) ----
    eps = 1e-5
    s1 = params["bn1_gamma"] / jnp.sqrt(params["bn1_var"] + eps)
    t1 = params["bn1_beta"] - params["bn1_mean"] * s1
    s2 = params["bn2_gamma"] / jnp.sqrt(params["bn2_var"] + eps)
    t2 = params["bn2_beta"] - params["bn2_mean"] * s2

    w1f = ((s1[:, None] * params["w1"]) * s2[None, :]).astype(compute_dtype)
    b1f = ((t1 @ params["w1"] + params["b1"]) * s2 + t2)
    b1f = b1f.reshape(1, f).astype(jnp.float32)
    w2 = params["w2"].astype(compute_dtype)
    b2 = params["b2"].reshape(1, n_out).astype(jnp.float32)

    # ---- batch tiling: ragged last block handled by Pallas (masked writes) ----
    blk = _pick_block(n, block_n, _num_tensorcores())
    grid = (pl.cdiv(n, blk),)
    bcast = lambda shape: pl.BlockSpec(shape, lambda i: (0, 0))

    return pl.pallas_call(
        _mlp_kernel,
        out_shape=jax.ShapeDtypeStruct((n, n_out), jnp.float32),
        grid_spec=pltpu.PrefetchScalarGridSpec(
            num_scalar_prefetch=0,
            grid=grid,
            in_specs=[
                pl.BlockSpec((blk, d), lambda i: (i, 0)),   # x tile (f32 in HBM)
                bcast((d, f)),                              # folded W1 (in, out)
                bcast((1, f)),                              # folded b1
                bcast((f, n_out)),                          # W2 (in, out)
                bcast((1, n_out)),                          # b2
            ],
            out_specs=pl.BlockSpec((blk, n_out), lambda i: (i, 0)),
        ),
        compiler_params=pltpu.CompilerParams(
            dimension_semantics=("parallel",)),
    )(x, w1f, b1f, w2, b2)


def init_params(key, in_size, fil_num, n_out=4):
    """Deterministic synthetic parameters matching _MLP.__init__ shapes."""
    ks = jax.random.split(key, 8)
    return {
        # bn1: BatchNorm1d(in_size)
        "bn1_gamma": jax.random.uniform(ks[0], (in_size,), jnp.float32, 0.5, 1.5),
        "bn1_beta":  jax.random.normal(ks[1], (in_size,), jnp.float32) * 0.1,
        "bn1_mean":  jax.random.normal(ks[2], (in_size,), jnp.float32) * 0.1,
        "bn1_var":   jax.random.uniform(ks[3], (in_size,), jnp.float32, 0.5, 1.5),
        # fc1: Linear(in_size, fil_num) — stored transposed (in, out)
        "w1": jax.random.normal(ks[4], (in_size, fil_num), jnp.float32)
              / jnp.sqrt(in_size),
        "b1": jax.random.normal(ks[5], (fil_num,), jnp.float32) * 0.01,
        # bn2: BatchNorm1d(fil_num)
        "bn2_gamma": jnp.ones((fil_num,), jnp.float32),
        "bn2_beta":  jnp.zeros((fil_num,), jnp.float32),
        "bn2_mean":  jnp.zeros((fil_num,), jnp.float32),
        "bn2_var":   jnp.ones((fil_num,), jnp.float32),
        # fc2: Linear(fil_num, 4) — stored transposed (in, out)
        "w2": jax.random.normal(ks[6], (fil_num, n_out), jnp.float32)
              / jnp.sqrt(fil_num),
        "b2": jax.random.normal(ks[7], (n_out,), jnp.float32) * 0.01,
    }


def _reference_forward(x, params):
    """Pure-JAX f32 reference of the eval-mode PyTorch forward."""
    eps = 1e-5
    s1 = params["bn1_gamma"] / jnp.sqrt(params["bn1_var"] + eps)
    h = (x - params["bn1_mean"]) * s1 + params["bn1_beta"]
    h = h @ params["w1"] + params["b1"]
    s2 = params["bn2_gamma"] / jnp.sqrt(params["bn2_var"] + eps)
    h = (h - params["bn2_mean"]) * s2 + params["bn2_beta"]
    h = jnp.where(h > 0, h, 0.01 * h)
    return h @ params["w2"] + params["b2"]


if __name__ == "__main__":
    in_size, fil_num = 16, 32
    key = jax.random.PRNGKey(0)
    kx, kp, kx2 = jax.random.split(key, 3)
    params = init_params(kp, in_size, fil_num)

    # Spec-sized batch (batch=2), f32 path: exact check of folded math.
    x = jax.random.normal(kx, (2, in_size), jnp.float32)
    ref = _reference_forward(x, params)

    out_f32 = jax.block_until_ready(
        mlp_forward(x, params, compute_dtype=jnp.float32))
    assert out_f32.shape == (2, 4), out_f32.shape
    assert jnp.allclose(out_f32, ref, atol=1e-5, rtol=1e-5), (out_f32, ref)

    # Default (bf16 matmul operands) path: looser tolerance vs f32 reference.
    out_bf16 = jax.block_until_ready(mlp_forward(x, params))
    assert out_bf16.shape == (2, 4), out_bf16.shape
    assert jnp.allclose(out_bf16, ref, atol=1e-1, rtol=1e-1), (out_bf16, ref)

    # Larger, non-multiple batch: exercises the ragged (masked) last block.
    x2 = jax.random.normal(kx2, (70, in_size), jnp.float32)
    ref2 = _reference_forward(x2, params)
    out2 = jax.block_until_ready(mlp_forward(x2, params))
    assert out2.shape == (70, 4), out2.shape
    assert jnp.allclose(out2, ref2, atol=1e-1, rtol=1e-1), (out2, ref2)

    # Small-block path: forces a multi-step grid plus a ragged final block.
    out3 = jax.block_until_ready(mlp_forward(x2, params, block_n=32))
    assert out3.shape == (70, 4), out3.shape
    assert jnp.allclose(out3, ref2, atol=1e-1, rtol=1e-1), (out3, ref2)

    print("KERNEL_OK")
</pallas_src>

<mosaic_0001>
module attributes {stable_mosaic.version = 11 : i64} {
  func.func @_mlp_kernel(%arg0: i32, %arg1: memref<16x16xf32, #tpu.memory_space<vmem>>, %arg2: memref<16x32xf32, #tpu.memory_space<vmem>>, %arg3: memref<1x32xf32, #tpu.memory_space<vmem>>, %arg4: memref<32x4xf32, #tpu.memory_space<vmem>>, %arg5: memref<1x4xf32, #tpu.memory_space<vmem>>, %arg6: memref<16x4xf32, #tpu.memory_space<vmem>>) attributes {dimension_semantics = [#tpu.dimension_semantics<parallel>], iteration_bounds = array<i64: 1>, scalar_prefetch = 0 : i64, scratch_operands = 0 : i64, tpu.core_type = #tpu.core_type<tc>, window_params = [{transform_indices = @transform_0, window_bounds = array<i64: 16, 16>}, {pipeline_mode = #tpu.pipeline_mode<synchronous>, transform_indices = @transform_1, window_bounds = array<i64: 16, 32>}, {pipeline_mode = #tpu.pipeline_mode<synchronous>, transform_indices = @transform_2, window_bounds = array<i64: 1, 32>}, {pipeline_mode = #tpu.pipeline_mode<synchronous>, transform_indices = @transform_3, window_bounds = array<i64: 32, 4>}, {pipeline_mode = #tpu.pipeline_mode<synchronous>, transform_indices = @transform_4, window_bounds = array<i64: 1, 4>}, {transform_indices = @transform_5, window_bounds = array<i64: 16, 4>}]} {
    %c0 = arith.constant 0 : index
    %c0_0 = arith.constant 0 : index
    %0 = vector.load %arg1[%c0, %c0_0] : memref<16x16xf32, #tpu.memory_space<vmem>>, vector<16x16xf32>
    %c0_1 = arith.constant 0 : index
    %c0_2 = arith.constant 0 : index
    %1 = vector.load %arg2[%c0_1, %c0_2] : memref<16x32xf32, #tpu.memory_space<vmem>>, vector<16x32xf32>
    %cst = arith.constant dense<0.000000e+00> : vector<16x32xf32>
    %2 = tpu.matmul %0, %1, %cst {dimension_numbers = #tpu.dot_dimension_numbers<[1], [0], [0], [1], [0, 0, 1, 1], [], []>} : vector<16x16xf32>, vector<16x32xf32>, vector<16x32xf32> -> vector<16x32xf32>
    %c0_3 = arith.constant 0 : index
    %c0_4 = arith.constant 0 : index
    %3 = vector.load %arg3[%c0_3, %c0_4] : memref<1x32xf32, #tpu.memory_space<vmem>>, vector<1x32xf32>
    %4 = vector.broadcast %3 : vector<1x32xf32> to vector<16x32xf32>
    %5 = arith.addf %2, %4 : vector<16x32xf32>
    %cst_5 = arith.constant 0.00999999977 : f32
    %6 = vector.broadcast %cst_5 : f32 to vector<16x32xf32>
    %7 = arith.mulf %6, %5 : vector<16x32xf32>
    %8 = arith.maximumf %5, %7 : vector<16x32xf32>
    %c0_6 = arith.constant 0 : index
    %c0_7 = arith.constant 0 : index
    %9 = vector.load %arg4[%c0_6, %c0_7] : memref<32x4xf32, #tpu.memory_space<vmem>>, vector<32x4xf32>
    %cst_8 = arith.constant dense<0.000000e+00> : vector<16x4xf32>
    %10 = tpu.matmul %8, %9, %cst_8 {dimension_numbers = #tpu.dot_dimension_numbers<[1], [0], [0], [1], [0, 0, 1, 1], [], []>} : vector<16x32xf32>, vector<32x4xf32>, vector<16x4xf32> -> vector<16x4xf32>
    %c0_9 = arith.constant 0 : index
    %c0_10 = arith.constant 0 : index
    %11 = vector.load %arg5[%c0_9, %c0_10] : memref<1x4xf32, #tpu.memory_space<vmem>>, vector<1x4xf32>
    %12 = vector.broadcast %11 : vector<1x4xf32> to vector<16x4xf32>
    %13 = arith.addf %10, %12 : vector<16x4xf32>
    %c0_11 = arith.constant 0 : index
    %c0_12 = arith.constant 0 : index
    %14 = vector.load %arg6[%c0_11, %c0_12] : memref<16x4xf32, #tpu.memory_space<vmem>>, vector<16x4xf32>
    tpu.vector_store %arg6[%c0_11, %c0_12], %13 {strides = array<i32>} : memref<16x4xf32, #tpu.memory_space<vmem>>, vector<16x4xf32>,
    return
  }
  func.func @transform_0(%arg0: i32) -> (i32, i32) {
    %c0_i32 = arith.constant 0 : i32
    %c0_i32_0 = arith.constant 0 : i32
    return %arg0, %c0_i32 : i32, i32
  }
  func.func @transform_1(%arg0: i32) -> (i32, i32) {
    %c0_i32 = arith.constant 0 : i32
    %c0_i32_0 = arith.constant 0 : i32
    %c0_i32_1 = arith.constant 0 : i32
    return %c0_i32, %c0_i32_0 : i32, i32
  }
  func.func @transform_2(%arg0: i32) -> (i32, i32) {
    %c0_i32 = arith.constant 0 : i32
    %c0_i32_0 = arith.constant 0 : i32
    %c0_i32_1 = arith.constant 0 : i32
    return %c0_i32, %c0_i32_0 : i32, i32
  }
  func.func @transform_3(%arg0: i32) -> (i32, i32) {
    %c0_i32 = arith.constant 0 : i32
    %c0_i32_0 = arith.constant 0 : i32
    %c0_i32_1 = arith.constant 0 : i32
    return %c0_i32, %c0_i32_0 : i32, i32
  }
  func.func @transform_4(%arg0: i32) -> (i32, i32) {
    %c0_i32 = arith.constant 0 : i32
    %c0_i32_0 = arith.constant 0 : i32
    %c0_i32_1 = arith.constant 0 : i32
    return %c0_i32, %c0_i32_0 : i32, i32
  }
  func.func @transform_5(%arg0: i32) -> (i32, i32) {
    %c0_i32 = arith.constant 0 : i32
    %c0_i32_0 = arith.constant 0 : i32
    return %arg0, %c0_i32 : i32, i32
  }
}

</mosaic_0001>

<llo_original>
// kernel: tpu_custom_call.1
$region0: #{tpu_custom_call.1}
  #allocation0 [shape = 'u32[]', space=smem, size = 0x4, offset = 0x4, fixed_abs, tag = 'smem constant byte address 0x4 - core index']
  #allocation1 [shape = 'u32[144,128]{1,0:T(1,128)}', space=vmem, size = 0x12000, scoped, tag = 'internal scratch']
  %s0 = inlined_call_operand.vmem [shape: f32[2,16], index: 0, kind: input, shape index: {}]
  %s1 = inlined_call_operand.vmem [shape: f32[16,32], index: 1, kind: input, shape index: {}]
  %s2 = inlined_call_operand.vmem [shape: f32[1,32], index: 2, kind: input, shape index: {}]
  %s3 = inlined_call_operand.vmem [shape: f32[32,4], index: 3, kind: input, shape index: {}]
  %s4 = inlined_call_operand.vmem [shape: f32[1,4], index: 4, kind: input, shape index: {}]
  %s5 = inlined_call_operand.hbm [shape: f32[2,4], index: 5, kind: output, shape index: {}]
  %s6 = sld [smem:[#allocation0]]
  $region30: #{tpu_custom_call.1} parent=0
    _
  %s8 = ssub.s32 1, %s6
  %s9 = scalar_select 0, %s8, %s6
  $region1: #{tpu_custom_call.1} parent=0
    #allocation2 [shape = 'u8[8192]{0}', space=vmem, size = 0x2000, scoped, tag = 'output window, operand 0, single buffered']
    #allocation3 [shape = 's32[1]{0}', space=sflag, size = 0x4, scoped, tag = 'scoped memory for tpu_custom_call.1']
    %10 = vsyncpa [#allocation3], 0
    // Predicated region
    $region2: #{tpu_custom_call.1} parent=1 // pred_check
      _
    $region3: #{tpu_custom_call.1} parent=1 // pred_check_branch
      %12 = sbr.rel (0) target = $region5
    $region4: #{tpu_custom_call.1} parent=1 // pred_region
      _
    $region5: #{tpu_custom_call.1} parent=1 // pred_fallthru
      _
    // Predicated region
    $region6: #{tpu_custom_call.1} parent=1 // pred_check
      _
    $region7: #{tpu_custom_call.1} parent=1 // pred_check_branch
      %14 = sbr.rel (0) target = $region9
    $region8: #{tpu_custom_call.1} parent=1 // pred_region
      _
    $region9: #{tpu_custom_call.1} parent=1 // pred_fallthru
      _
    // Predicated region
    $region10: #{tpu_custom_call.1} parent=1 // pred_check
      _
    $region11: #{tpu_custom_call.1} parent=1 // pred_check_branch
      %16 = sbr.rel (0) target = $region13
    $region12: #{tpu_custom_call.1} parent=1 // pred_region
      _
    $region13: #{tpu_custom_call.1} parent=1 // pred_fallthru
      _
    // Predicated region
    $region14: #{tpu_custom_call.1} parent=1 // pred_check
      _
    $region15: #{tpu_custom_call.1} parent=1 // pred_check_branch
      %18 = sbr.rel (0) target = $region17
    $region16: #{tpu_custom_call.1} parent=1 // pred_region
      _
    $region17: #{tpu_custom_call.1} parent=1 // pred_fallthru
      _
    // Predicated region
    $region18: #{tpu_custom_call.1} parent=1 // pred_check
      _
    $region19: #{tpu_custom_call.1} parent=1 // pred_check_branch
      %20 = sbr.rel (0) target = $region21
    $region20: #{tpu_custom_call.1} parent=1 // pred_region
      _
    $region21: #{tpu_custom_call.1} parent=1 // pred_fallthru
      _
    %v21 = vld [vmem:[%s0] sm:$0xff]
    %v22 = vld [vmem:[%s0 + $0x8] sm:$0xff]
    %v23 = vld [vmem:[%s1] sm:$0xff]
    %v24 = vld [vmem:[%s1 + $0x8] sm:$0xff]
    %v25 = vld [vmem:[%s2] sm:$0x1]
    %v27 = vlaneseq
    %v28 = vshrl.u32 %v27, 7
    %v29 = vsub.s32 0, %v28
    %v30 = vrot.slane %v25, %v29
    %vm32 = vcmask 130048
    %v34 = vsel %vm32, %v21, 0
    %v37 = vsel %vm32, %v22, 0
    %39 = vmatprep.subr.mxu0 0.0
    %40 = vmatpush1.msra.mxu0 %v23
    %41 = vmatprep.subr.mxu0 0.0
    %42 = vmatpush1.msra.mxu0 %v24
    %43 = vmatprep.subr.mxu0 0.0
    %44 = vmatpush1.msra.mxu0 0.0
    %45 = vmatprep.subr.mxu0 0.0
    %46 = vmatpush1.msra.mxu0 0.0
    %47 = vmatprep.subr.mxu0 0.0
    %48 = vmatpush1.msra.mxu0 0.0
    %49 = vmatprep.subr.mxu0 0.0
    %50 = vmatpush1.msra.mxu0 0.0
    %51 = vmatprep.subr.mxu0 0.0
    %52 = vmatpush1.msra.mxu0 0.0
    %53 = vmatprep.subr.mxu0 0.0
    %54 = vmatpush1.msra.mxu0 0.0
    %55 = vmatprep.subr.mxu0 0.0
    %56 = vmatpush1.msra.mxu0 0.0
    %57 = vmatprep.subr.mxu0 0.0
    %58 = vmatpush1.msra.mxu0 0.0
    %59 = vmatprep.subr.mxu0 0.0
    %60 = vmatpush1.msra.mxu0 0.0
    %61 = vmatprep.subr.mxu0 0.0
    %62 = vmatpush1.msra.mxu0 0.0
    %63 = vmatprep.subr.mxu0 0.0
    %64 = vmatpush1.msra.mxu0 0.0
    %65 = vmatprep.subr.mxu0 0.0
    %66 = vmatpush1.msra.mxu0 0.0
    %67 = vmatprep.subr.mxu0 0.0
    %68 = vmatpush1.msra.mxu0 0.0
    %69 = vmatprep.subr.mxu0 0.0
    %70 = vmatpush1.msra.mxu0 0.0
    %71 = vmatprep.subr.mxu0 0.0
    %72 = vmatpush1.msra.mxu0 0.0
    %73 = vmatprep.subr.mxu0 0.0
    %74 = vmatpush1.msra.mxu0 0.0
    %75 = vmatprep.subr.mxu0 0.0
    %76 = vmatpush1.msra.mxu0 0.0
    %77 = vmatprep.subr.mxu0 0.0
    %78 = vmatpush1.msra.mxu0 0.0
    %79 = vmatprep.subr.mxu0 0.0
    %80 = vmatpush1.msra.mxu0 0.0
    %81 = vmatprep.subr.mxu0 0.0
    %82 = vmatpush1.msra.mxu0 0.0
    %83 = vmatprep.subr.mxu0 0.0
    %84 = vmatpush1.msra.mxu0 0.0
    %85 = vmatprep.subr.mxu0 0.0
    %86 = vmatpush1.msra.mxu0 0.0
    %87 = vmatprep.subr.mxu0 0.0
    %88 = vmatpush1.msra.mxu0 0.0
    %89 = vmatprep.subr.mxu0 0.0
    %90 = vmatpush1.msra.mxu0 0.0
    %91 = vmatprep.subr.mxu0 0.0
    %92 = vmatpush1.msra.mxu0 0.0
    %93 = vmatprep.subr.mxu0 0.0
    %94 = vmatpush1.msra.mxu0 0.0
    %95 = vmatprep.subr.mxu0 0.0
    %96 = vmatpush1.msra.mxu0 0.0
    %97 = vmatprep.subr.mxu0 0.0
    %98 = vmatpush1.msra.mxu0 0.0
    %99 = vmatprep.subr.mxu0 0.0
    %100 = vmatpush1.msra.mxu0 0.0
    %101 = vmatprep.subr.mxu0 0.0
    %102 = vmatpush1.msra.mxu0 0.0
    %103 = vmatprep.mubr.f32.mxu0 0.0
    %104 = vmatmul.mubr.f32.gmra.mrb[0].mxu0 %v34
    %v105 = vpop.f32.mrb[0].mxu0
    %v106 = vadd.f32 %v30, %v105
    %v107 = vpop.f32.mrb[0].mxu0
    %108 = vmatprep.mubr.f32.mxu0 0.0
    %109 = vmatmul.mubr.f32.gmra.mrb[0].mxu0 %v37
    %v110 = vpop.f32.mrb[0].mxu0
    %v111 = vadd.f32 %v30, %v110
    %v112 = vpop.f32.mrb[0].mxu0
    %113 = vdwg.mxu0
    %v114 = vmul.f32 %v106, 0.01
    %v115 = vmul.f32 %v111, 0.01
    %v116 = vmax.f32 %v106, %v114
    %v117 = vmax.f32 %v111, %v115
    %v118 = vld [vmem:[%s3] sm:$0xff]
    %v119 = vld [vmem:[%s3 + $0x8] sm:$0xff]
    %v120 = vld [vmem:[%s3 + $0x10] sm:$0xff]
    %v121 = vld [vmem:[%s3 + $0x18] sm:$0xff]
    %v122 = vld [vmem:[%s4] sm:$0x1]
    %v124 = vlaneseq
    %v125 = vshrl.u32 %v124, 7
    %v126 = vsub.s32 0, %v125
    %v127 = vrot.slane %v122, %v126
    %vm129 = vcmask 261120
    %v131 = vsel %vm129, %v116, 0
    %v134 = vsel %vm129, %v117, 0
    %136 = vmatprep.subr.mxu0 0.0
    %137 = vmatpush1.msra.mxu0 %v118
    %138 = vmatprep.subr.mxu0 0.0
    %139 = vmatpush1.msra.mxu0 %v119
    %140 = vmatprep.subr.mxu0 0.0
    %141 = vmatpush1.msra.mxu0 %v120
    %142 = vmatprep.subr.mxu0 0.0
    %143 = vmatpush1.msra.mxu0 %v121
    %144 = vmatprep.subr.mxu0 0.0
    %145 = vmatpush1.msra.mxu0 0.0
    %146 = vmatprep.subr.mxu0 0.0
    %147 = vmatpush1.msra.mxu0 0.0
    %148 = vmatprep.subr.mxu0 0.0
    %149 = vmatpush1.msra.mxu0 0.0
    %150 = vmatprep.subr.mxu0 0.0
    %151 = vmatpush1.msra.mxu0 0.0
    %152 = vmatprep.subr.mxu0 0.0
    %153 = vmatpush1.msra.mxu0 0.0
    %154 = vmatprep.subr.mxu0 0.0
    %155 = vmatpush1.msra.mxu0 0.0
    %156 = vmatprep.subr.mxu0 0.0
    %157 = vmatpush1.msra.mxu0 0.0
    %158 = vmatprep.subr.mxu0 0.0
    %159 = vmatpush1.msra.mxu0 0.0
    %160 = vmatprep.subr.mxu0 0.0
    %161 = vmatpush1.msra.mxu0 0.0
    %162 = vmatprep.subr.mxu0 0.0
    %163 = vmatpush1.msra.mxu0 0.0
    %164 = vmatprep.subr.mxu0 0.0
    %165 = vmatpush1.msra.mxu0 0.0
    %166 = vmatprep.subr.mxu0 0.0
    %167 = vmatpush1.msra.mxu0 0.0
    %168 = vmatprep.subr.mxu0 0.0
    %169 = vmatpush1.msra.mxu0 0.0
    %170 = vmatprep.subr.mxu0 0.0
    %171 = vmatpush1.msra.mxu0 0.0
    %172 = vmatprep.subr.mxu0 0.0
    %173 = vmatpush1.msra.mxu0 0.0
    %174 = vmatprep.subr.mxu0 0.0
    %175 = vmatpush1.msra.mxu0 0.0
    %176 = vmatprep.subr.mxu0 0.0
    %177 = vmatpush1.msra.mxu0 0.0
    %178 = vmatprep.subr.mxu0 0.0
    %179 = vmatpush1.msra.mxu0 0.0
    %180 = vmatprep.subr.mxu0 0.0
    %181 = vmatpush1.msra.mxu0 0.0
    %182 = vmatprep.subr.mxu0 0.0
    %183 = vmatpush1.msra.mxu0 0.0
    %184 = vmatprep.subr.mxu0 0.0
    %185 = vmatpush1.msra.mxu0 0.0
    %186 = vmatprep.subr.mxu0 0.0
    %187 = vmatpush1.msra.mxu0 0.0
    %188 = vmatprep.subr.mxu0 0.0
    %189 = vmatpush1.msra.mxu0 0.0
    %190 = vmatprep.subr.mxu0 0.0
    %191 = vmatpush1.msra.mxu0 0.0
    %192 = vmatprep.subr.mxu0 0.0
    %193 = vmatpush1.msra.mxu0 0.0
    %194 = vmatprep.subr.mxu0 0.0
    %195 = vmatpush1.msra.mxu0 0.0
    %196 = vmatprep.subr.mxu0 0.0
    %197 = vmatpush1.msra.mxu0 0.0
    %198 = vmatprep.subr.mxu0 0.0
    %199 = vmatpush1.msra.mxu0 0.0
    %200 = vmatprep.mubr.f32.mxu0 0.0
    %201 = vmatmul.mubr.f32.gmra.mrb[0].mxu0 %v131
    %v202 = vpop.f32.mrb[0].mxu0
    %v203 = vadd.f32 %v127, %v202
    %v204 = vpop.f32.mrb[0].mxu0
    %205 = vmatprep.mubr.f32.mxu0 0.0
    %206 = vmatmul.mubr.f32.gmra.mrb[0].mxu0 %v134
    %v207 = vpop.f32.mrb[0].mxu0
    %v208 = vadd.f32 %v127, %v207
    %v209 = vpop.f32.mrb[0].mxu0
    %210 = vdwg.mxu0
    %vm211 = vcmask 31744
    %212 = vst.msk [vmem:[#allocation2] sm:$0xff] %vm211, %v203
    %213 = vst.msk [vmem:[#allocation2 + $0x8] sm:$0xff] %vm211, %v208
    // Predicated region
    $region22: #{tpu_custom_call.1} parent=1 // pred_check
      _
    $region23: #{tpu_custom_call.1} parent=1 // pred_check_branch
      %215 = sbr.rel (0) target = $region25
    $region24: #{tpu_custom_call.1} parent=1 // pred_region
      %s217 = ssub.s32 256, 32
      %218 = vsyncadd [#allocation3], %s217
      %s219 = sshll.u32 [#allocation2], 4
      %s220 = int_to_ptr.vmem [resolvable:$true] %s219
      %225 = dma.vmem_to_hbm [thread:$0]  %s220, 32, %s5, [#allocation3], 32, 32, 2
    $region25: #{tpu_custom_call.1} parent=1 // pred_fallthru
      _
    // Predicated region
    $region26: #{tpu_custom_call.1} parent=1 // pred_check
      _
    $region27: #{tpu_custom_call.1} parent=1 // pred_check_branch
      %227 = sbr.rel (0) target = $region29
    $region28: #{tpu_custom_call.1} parent=1 // pred_region
      %228 = dma.done [#allocation3], 256
    $region29: #{tpu_custom_call.1} parent=1 // pred_fallthru
      _
    %229 = vsyncpa [#allocation3], 1

</llo_original>
